<compile_context>
chip_gen: v5e
topology: v5e:2x2
jax: 0.10.0
libtpu: 0.0.40
codegen_flags: <defaults>
</compile_context>

<pallas_src>
import jax
import jax.numpy as jnp
from jax.experimental import pallas as pl
from jax.experimental.pallas import tpu as pltpu


def _hardswish_kernel(x_ref, o_ref):
    x = x_ref[...]
    # HardSigmoid(x) = ReLU6(x + 3) / 6 ; HardSwish(x) = x * HardSigmoid(x)
    hs = jnp.clip(x + 3.0, 0.0, 6.0) * (1.0 / 6.0)
    o_ref[...] = (x * hs).astype(o_ref.dtype)


def _hardswish_jnp(x):
    # Tiny-tail / degenerate-size fallback (plain XLA elementwise).
    return x * (jnp.clip(x + 3.0, 0.0, 6.0) * (1.0 / 6.0))


_LANE_CANDIDATES = (4096, 2048, 1024, 512, 256, 128)   # lane-dense, widest first
_TARGET_BLOCK_BYTES = 2 * 1024 * 1024                   # ~2 MiB per buffer


def _pick_lane(n: int):
    for lane in _LANE_CANDIDATES:
        if n % lane == 0:
            return lane
    return None


def _hardswish_2d(x2d: jax.Array, *, donate: bool = False) -> jax.Array:
    """Run the kernel over a contiguous (rows, lane) slab; lane % 128 == 0."""
    rows, lane = x2d.shape
    itemsize = jnp.dtype(x2d.dtype).itemsize
    # Sublane multiple for the packed layout: 8 (f32), 16 (bf16), 32 (int8/fp8).
    sub_mult = max(8, 32 // max(itemsize, 1))

    block_rows = _TARGET_BLOCK_BYTES // (lane * itemsize)
    block_rows = max(sub_mult, (block_rows // sub_mult) * sub_mult)
    if block_rows >= rows:
        block_rows = rows              # block == full dim is always a legal shape

    # Ragged last block (rows % block_rows != 0) is masked by Pallas.
    grid = (pl.cdiv(rows, block_rows),)

    return pl.pallas_call(
        _hardswish_kernel,
        out_shape=jax.ShapeDtypeStruct((rows, lane), x2d.dtype),
        grid_spec=pltpu.PrefetchScalarGridSpec(
            num_scalar_prefetch=0,
            grid=grid,
            in_specs=[pl.BlockSpec((block_rows, lane), lambda i: (i, 0))],
            out_specs=pl.BlockSpec((block_rows, lane), lambda i: (i, 0)),
        ),
        compiler_params=pltpu.CompilerParams(
            dimension_semantics=("parallel",),   # lets v7x shard steps over 2 TCs
        ),
        # Reuse the input HBM buffer for the output only when the caller has
        # donated x (otherwise XLA would insert a defensive copy).
        input_output_aliases=({0: 0} if donate else {}),
    )(x2d)


def hardswish(x: jax.Array, *, donate: bool = False) -> jax.Array:
    """HardSwish applied elementwise; works for any shape/layout (e.g. NCHW)."""
    orig_shape = x.shape
    n = x.size
    if n == 0:
        return x

    x_flat = jnp.ravel(x)

    lane = _pick_lane(n)
    if lane is not None:
        # Fast path (the usual case for NN activations): x.size % 128 == 0, so
        # the (rows, lane) reshape is a free contiguous view — no pad, no slice.
        out2d = _hardswish_2d(x_flat.reshape(n // lane, lane), donate=donate)
        return out2d.reshape(orig_shape)

    # Rare ragged path: kernel on the 128-aligned prefix, tiny jnp tail.
    n_main = (n // 128) * 128
    if n_main == 0:
        return _hardswish_jnp(x)
    main = _hardswish_2d(x_flat[:n_main].reshape(n_main // 128, 128))
    tail = _hardswish_jnp(x_flat[n_main:])
    return jnp.concatenate([main.reshape(-1), tail]).reshape(orig_shape)


def _hardswish_ref(x):
    return x * jnp.clip(x + 3.0, 0.0, 6.0) / 6.0


if __name__ == "__main__":
    key = jax.random.PRNGKey(0)

    # NCHW, matching a typical conv activation input (HardSwish's usual site).
    x = jax.random.normal(key, (2, 4, 16, 16), dtype=jnp.float32) * 4.0
    out = hardswish(x)
    jax.block_until_ready(out)
    ref = _hardswish_ref(x)
    assert out.shape == x.shape and out.dtype == x.dtype
    assert jnp.allclose(out, ref, atol=1e-6, rtol=1e-6), "mismatch vs reference"

    # Ragged-size tensor (exercises the aligned-prefix + jnp-tail path).
    x2 = jax.random.normal(jax.random.PRNGKey(1), (5, 3, 7, 11), dtype=jnp.float32) * 4.0
    out2 = hardswish(x2)
    jax.block_until_ready(out2)
    assert out2.shape == x2.shape and out2.dtype == x2.dtype
    assert jnp.allclose(out2, _hardswish_ref(x2), atol=1e-6, rtol=1e-6)

    print("KERNEL_OK")
</pallas_src>

<mosaic_0001>
module attributes {stable_mosaic.version = 11 : i64} {
  func.func @_hardswish_kernel(%arg0: i32, %arg1: memref<1x2048xf32, #tpu.memory_space<vmem>>, %arg2: memref<1x2048xf32, #tpu.memory_space<vmem>>) attributes {dimension_semantics = [#tpu.dimension_semantics<parallel>], iteration_bounds = array<i64: 1>, scalar_prefetch = 0 : i64, scratch_operands = 0 : i64, tpu.core_type = #tpu.core_type<tc>, window_params = [{transform_indices = @transform_0, window_bounds = array<i64: 1, 2048>}, {transform_indices = @transform_1, window_bounds = array<i64: 1, 2048>}]} {
    %c0 = arith.constant 0 : index
    %c0_0 = arith.constant 0 : index
    %0 = vector.load %arg1[%c0, %c0_0] : memref<1x2048xf32, #tpu.memory_space<vmem>>, vector<1x2048xf32>
    %cst = arith.constant 3.000000e+00 : f32
    %1 = vector.broadcast %cst : f32 to vector<1x2048xf32>
    %2 = arith.addf %0, %1 : vector<1x2048xf32>
    %cst_1 = arith.constant 0.000000e+00 : f32
    %cst_2 = arith.constant 6.000000e+00 : f32
    %3 = vector.broadcast %cst_1 : f32 to vector<1x2048xf32>
    %4 = arith.maximumf %3, %2 : vector<1x2048xf32>
    %5 = vector.broadcast %cst_2 : f32 to vector<1x2048xf32>
    %6 = arith.minimumf %5, %4 : vector<1x2048xf32>
    %cst_3 = arith.constant 0.166666672 : f32
    %7 = vector.broadcast %cst_3 : f32 to vector<1x2048xf32>
    %8 = arith.mulf %6, %7 : vector<1x2048xf32>
    %9 = arith.mulf %0, %8 : vector<1x2048xf32>
    %c0_4 = arith.constant 0 : index
    %c0_5 = arith.constant 0 : index
    %10 = vector.load %arg2[%c0_4, %c0_5] : memref<1x2048xf32, #tpu.memory_space<vmem>>, vector<1x2048xf32>
    tpu.vector_store %arg2[%c0_4, %c0_5], %9 {strides = array<i32>} : memref<1x2048xf32, #tpu.memory_space<vmem>>, vector<1x2048xf32>,
    return
  }
  func.func @transform_0(%arg0: i32) -> (i32, i32) {
    %c0_i32 = arith.constant 0 : i32
    %c0_i32_0 = arith.constant 0 : i32
    return %arg0, %c0_i32 : i32, i32
  }
  func.func @transform_1(%arg0: i32) -> (i32, i32) {
    %c0_i32 = arith.constant 0 : i32
    %c0_i32_0 = arith.constant 0 : i32
    return %arg0, %c0_i32 : i32, i32
  }
}

</mosaic_0001>

<llo_original>
// kernel: tpu_custom_call.1
$region0: #{tpu_custom_call.1}
  #allocation0 [shape = 'u32[]', space=smem, size = 0x4, offset = 0x4, fixed_abs, tag = 'smem constant byte address 0x4 - core index']
  #allocation1 [shape = 'u32[72,128]{1,0:T(1,128)}', space=vmem, size = 0x9000, scoped, tag = 'internal scratch']
  %s0 = inlined_call_operand.hbm [shape: f32[1,2048], index: 0, kind: input, shape index: {}]
  %s1 = inlined_call_operand.hbm [shape: f32[1,2048], index: 1, kind: output, shape index: {}]
  %s2 = sld [smem:[#allocation0]]
  $region18: #{tpu_custom_call.1} parent=0
    _
  %s4 = ssub.s32 1, %s2
  %s5 = scalar_select 0, %s4, %s2
  $region1: #{tpu_custom_call.1} parent=0
    #allocation2 [shape = 'u8[8192]{0}', space=vmem, size = 0x2000, scoped, tag = 'input window, operand 0, single buffered']
    #allocation3 [shape = 's32[1]{0}', space=sflag, size = 0x4, scoped, tag = 'scoped memory for tpu_custom_call.1']
    #allocation4 [shape = 's32[1]{0}', space=sflag, size = 0x4, scoped, tag = 'scoped memory for tpu_custom_call.1']
    #allocation5 [shape = 'u8[8192]{0}', space=vmem, size = 0x2000, scoped, tag = 'output window, operand 0, single buffered']
    %6 = vsyncpa [#allocation3], 0
    %7 = vsyncpa [#allocation4], 0
    // Predicated region
    $region2: #{tpu_custom_call.1} parent=1 // pred_check
      _
    $region3: #{tpu_custom_call.1} parent=1 // pred_check_branch
      %9 = sbr.rel (0) target = $region5
    $region4: #{tpu_custom_call.1} parent=1 // pred_region
      %11 = vsyncadd [#allocation3], 0
      %s13 = sshll.u32 %s0, 4
      %s14 = int_to_ptr.hbm [resolvable:$true] %s13
      %s15 = sshll.u32 [#allocation2], 4
      %s16 = int_to_ptr.vmem [resolvable:$true] %s15
      %18 = dma.hbm_to_vmem [thread:$0]  %s14, 256, %s16, [#allocation3]
    $region5: #{tpu_custom_call.1} parent=1 // pred_fallthru
      _
    // Predicated region
    $region6: #{tpu_custom_call.1} parent=1 // pred_check
      _
    $region7: #{tpu_custom_call.1} parent=1 // pred_check_branch
      %20 = sbr.rel (0) target = $region9
    $region8: #{tpu_custom_call.1} parent=1 // pred_region
      %22 = dma.done [#allocation3], 256
    $region9: #{tpu_custom_call.1} parent=1 // pred_fallthru
      _
    %v23 = vld [vmem:[#allocation2] sm:$0xff]
    %v24 = vld [vmem:[#allocation2 + $0x8] sm:$0xff]
    %v25 = vadd.f32 %v23, 3.0
    %v26 = vadd.f32 %v24, 3.0
    %v27 = vmax.f32 %v25, 0.0
    %v28 = vmax.f32 %v26, 0.0
    %v29 = vmin.f32 %v27, 6.0
    %v30 = vmin.f32 %v28, 6.0
    %v31 = vmul.f32 %v29, 0.16666667
    %v32 = vmul.f32 %v30, 0.16666667
    %v33 = vmul.f32 %v23, %v31
    %v34 = vmul.f32 %v24, %v32
    %35 = vst [vmem:[#allocation5] sm:$0xff] %v33
    %36 = vst [vmem:[#allocation5 + $0x8] sm:$0xff] %v34
    // Predicated region
    $region10: #{tpu_custom_call.1} parent=1 // pred_check
      _
    $region11: #{tpu_custom_call.1} parent=1 // pred_check_branch
      %38 = sbr.rel (0) target = $region13
    $region12: #{tpu_custom_call.1} parent=1 // pred_region
      %40 = vsyncadd [#allocation4], 0
      %s42 = sshll.u32 [#allocation5], 4
      %s43 = int_to_ptr.vmem [resolvable:$true] %s42
      %s44 = sshll.u32 %s1, 4
      %s45 = int_to_ptr.hbm [resolvable:$true] %s44
      %47 = dma.vmem_to_hbm [thread:$0]  %s43, 256, %s45, [#allocation4]
    $region13: #{tpu_custom_call.1} parent=1 // pred_fallthru
      _
    // Predicated region
    $region14: #{tpu_custom_call.1} parent=1 // pred_check
      _
    $region15: #{tpu_custom_call.1} parent=1 // pred_check_branch
      %49 = sbr.rel (0) target = $region17
    $region16: #{tpu_custom_call.1} parent=1 // pred_region
      %51 = dma.done [#allocation4], 256
    $region17: #{tpu_custom_call.1} parent=1 // pred_fallthru
      _
    %52 = vsyncpa [#allocation3], 1
    %53 = vsyncpa [#allocation4], 1

</llo_original>
